<compile_context>
chip_gen: v7x
topology: tpu7x:2x2x1
jax: 0.10.0
libtpu: 0.0.40
codegen_flags: <defaults>
</compile_context>

<pallas_src>
import functools

import jax
import jax.numpy as jnp
from jax.experimental import pallas as pl
from jax.experimental.pallas import tpu as pltpu

BN_EPS = 1e-5


def _cdiv(a, b):
    return -(-a // b)


def _round_up(n, m):
    return _cdiv(n, m) * m


def _choose_batch_tiling(B, block_b):
    """Pick (tile_rows, padded_batch, num_tiles) with <8 rows of pad per tile."""
    # >= 2 grid steps for large batches so v7x megacore shards across its 2 TCs
    # (also keeps tb >= 256 for the 256-wide MXU on v6e/v7x).
    min_tiles = 2 if B >= 512 else 1
    num_tiles = max(_cdiv(B, block_b), min_tiles)
    num_tiles = min(num_tiles, max(_cdiv(B, 8), 1))   # never below 8 rows/tile
    tb = _round_up(_cdiv(B, num_tiles), 8)            # sublane-aligned tile
    num_tiles = _cdiv(B, tb)
    b_pad = tb * num_tiles
    return tb, b_pad, num_tiles


def _mlp_kernel(x_ref,
                w1_ref, b1_ref,
                w2_ref, b2_ref,
                w3_ref, b3_ref,
                w4_ref, b4_ref,
                o_ref):
    """4 MXU dots + 3 ReLUs. BN pre-folded into W/b on the host.

    x is already bf16 (no cast needed for layer 1); accumulation is f32;
    bias add / ReLU stay f32; activations recast to bf16 only right before
    each subsequent dot; final store is bf16.
    """
    h = jnp.dot(x_ref[...], w1_ref[...],
                preferred_element_type=jnp.float32) + b1_ref[...]
    h = jnp.maximum(h, 0.0)

    h = jnp.dot(h.astype(w2_ref.dtype), w2_ref[...],
                preferred_element_type=jnp.float32) + b2_ref[...]
    h = jnp.maximum(h, 0.0)

    h = jnp.dot(h.astype(w3_ref.dtype), w3_ref[...],
                preferred_element_type=jnp.float32) + b3_ref[...]
    h = jnp.maximum(h, 0.0)

    h = jnp.dot(h.astype(w4_ref.dtype), w4_ref[...],
                preferred_element_type=jnp.float32) + b4_ref[...]
    o_ref[...] = h.astype(o_ref.dtype)


@functools.partial(jax.jit, static_argnames=("num_classes", "block_b", "out_dtype"))
def mlp_forward(x, prepared_params, num_classes, block_b=1024,
                out_dtype=jnp.bfloat16):
    """x: [B, input_size]. prepared_params: folded/padded [w1,b1,...,w4,b4]."""
    B, K = x.shape
    assert prepared_params[0].shape[0] == K, "params prepared for different input_size"
    n_pad = prepared_params[-1].shape[1]          # padded output features (>=128)

    tb, b_pad, num_tiles = _choose_batch_tiling(B, block_b)

    # bf16 x halves the dominant HBM stream; no feature-dim padding at all,
    # batch padded only by the < 8-row-per-tile remainder when needed.
    x = x.astype(jnp.bfloat16)
    if b_pad != B:
        x = jnp.pad(x, ((0, b_pad - B), (0, 0)))

    x_spec = pl.BlockSpec((tb, K), lambda i: (i, 0))
    out_spec = pl.BlockSpec((tb, n_pad), lambda i: (i, 0))
    # Weights/biases: full-array blocks with constant index_map -> stay
    # VMEM-resident across batch tiles (no re-fetch per grid step).
    param_specs = [pl.BlockSpec(p.shape, lambda i: (0, 0)) for p in prepared_params]

    out = pl.pallas_call(
        _mlp_kernel,
        out_shape=jax.ShapeDtypeStruct((b_pad, n_pad), out_dtype),
        grid=(num_tiles,),
        in_specs=[x_spec] + param_specs,
        out_specs=out_spec,
        compiler_params=pltpu.CompilerParams(
            dimension_semantics=("parallel",)),
    )(x, *prepared_params)

    # Slice back to the logical logits. (If the consumer can read the padded
    # bf16 slab directly, return `out` instead to save this copy.)
    return out[:B, :num_classes]


def init_raw_params(key, input_size, num_classes):
    """Deterministic f32 params mirroring the PyTorch module (eval mode)."""
    dims = [input_size, 256, 128, 64, num_classes]
    params = []
    keys = jax.random.split(key, 8)
    ki = 0
    for li in range(4):
        fan_in, fan_out = dims[li], dims[li + 1]
        bound = 1.0 / jnp.sqrt(fan_in)
        w = jax.random.uniform(keys[ki], (fan_in, fan_out), jnp.float32, -bound, bound)
        ki += 1
        b = jax.random.uniform(keys[ki], (1, fan_out), jnp.float32, -bound, bound)
        ki += 1
        params.extend([w, b])
        if li < 3:
            params.extend([
                jnp.ones((1, fan_out), jnp.float32),    # gamma
                jnp.zeros((1, fan_out), jnp.float32),   # beta
                jnp.zeros((1, fan_out), jnp.float32),   # running_mean
                jnp.ones((1, fan_out), jnp.float32),    # running_var
            ])
    return params


def _pad2d(a, rows, cols):
    return jnp.pad(a, ((0, rows - a.shape[0]), (0, cols - a.shape[1])))


def prepare_params(raw_params, input_size, num_classes, weight_dtype=jnp.bfloat16):
    """Fold eval-mode BN into fc weights/biases; pad hidden/output feature dims
    to 128-lane multiples (input dim is left unpadded); cast W to bf16."""
    dims = [input_size, 256, 128, 64, num_classes]
    pdims = [input_size] + [_round_up(d, 128) for d in dims[1:]]
    prepared = []
    idx = 0
    for li in range(4):
        w, b = raw_params[idx], raw_params[idx + 1]
        idx += 2
        if li < 3:
            g, be, m, v = raw_params[idx:idx + 4]
            idx += 4
            scale = g * jax.lax.rsqrt(v + BN_EPS)          # (1, out)
            w = w * scale                                  # fold BN scale into W
            b = (b - m) * scale + be                       # fold BN shift into b
        # Pad AFTER folding so padded rows/cols are exactly zero.
        w = _pad2d(w, pdims[li], pdims[li + 1]).astype(weight_dtype)
        b = _pad2d(b, 1, pdims[li + 1]).astype(jnp.float32)
        prepared.extend([w, b])
    return prepared


def reference_forward_f32(x, raw_params):
    """Pure-JAX f32 reference with the original (unfolded) eval-mode semantics."""
    (w1, b1, g1, be1, m1, v1,
     w2, b2, g2, be2, m2, v2,
     w3, b3, g3, be3, m3, v3,
     w4, b4) = raw_params
    h = x @ w1 + b1
    h = (h - m1) * jax.lax.rsqrt(v1 + BN_EPS) * g1 + be1
    h = jnp.maximum(h, 0.0)
    h = h @ w2 + b2
    h = (h - m2) * jax.lax.rsqrt(v2 + BN_EPS) * g2 + be2
    h = jnp.maximum(h, 0.0)
    h = h @ w3 + b3
    h = (h - m3) * jax.lax.rsqrt(v3 + BN_EPS) * g3 + be3
    h = jnp.maximum(h, 0.0)
    return h @ w4 + b4


def reference_forward_matched(x, prepared_params, num_classes,
                              out_dtype=jnp.bfloat16):
    """Pure-JAX reference replicating the kernel's exact precision recipe."""
    h = x.astype(jnp.bfloat16)
    for li in range(4):
        w, b = prepared_params[2 * li], prepared_params[2 * li + 1]
        h = jnp.dot(h.astype(w.dtype), w, preferred_element_type=jnp.float32) + b
        if li < 3:
            h = jnp.maximum(h, 0.0)
    return h.astype(out_dtype)[:, :num_classes]


if __name__ == "__main__":
    batch = 8
    input_size = 200   # PCA(n_components=200) in the original script
    num_classes = 16   # small synthetic class count

    key = jax.random.PRNGKey(0)
    kx, kp = jax.random.split(key)
    x = jax.random.normal(kx, (batch, input_size), dtype=jnp.float32)

    raw_params = init_raw_params(kp, input_size, num_classes)
    prepared = prepare_params(raw_params, input_size, num_classes)

    out = mlp_forward(x, prepared, num_classes)
    out = jax.block_until_ready(out)
    assert out.shape == (batch, num_classes)

    # 1) Validate kernel mechanics against the same-precision (bf16) math.
    ref_matched = reference_forward_matched(x, prepared, num_classes)
    assert jnp.allclose(out.astype(jnp.float32), ref_matched.astype(jnp.float32),
                        atol=2e-2, rtol=2e-2), \
        "mismatch vs matched-precision JAX reference"

    # 2) Validate semantics against the original f32 eval-mode module
    #    (looser tolerance covers the intentional bf16 input/weight/activation/
    #     output casts).
    ref_f32 = reference_forward_f32(x, raw_params)
    assert jnp.allclose(out.astype(jnp.float32), ref_f32, atol=5e-2, rtol=5e-2), \
        "mismatch vs original f32 reference"

    print("KERNEL_OK")
</pallas_src>

<mosaic_0001>
module attributes {stable_mosaic.version = 11 : i64} {
  func.func @_mlp_kernel(%arg0: i32, %arg1: memref<8x200xbf16, #tpu.memory_space<vmem>>, %arg2: memref<200x256xbf16, #tpu.memory_space<vmem>>, %arg3: memref<1x256xf32, #tpu.memory_space<vmem>>, %arg4: memref<256x128xbf16, #tpu.memory_space<vmem>>, %arg5: memref<1x128xf32, #tpu.memory_space<vmem>>, %arg6: memref<128x128xbf16, #tpu.memory_space<vmem>>, %arg7: memref<1x128xf32, #tpu.memory_space<vmem>>, %arg8: memref<128x128xbf16, #tpu.memory_space<vmem>>, %arg9: memref<1x128xf32, #tpu.memory_space<vmem>>, %arg10: memref<8x128xbf16, #tpu.memory_space<vmem>>) attributes {dimension_semantics = [#tpu.dimension_semantics<parallel>], iteration_bounds = array<i64: 1>, scalar_prefetch = 0 : i64, scratch_operands = 0 : i64, tpu.core_type = #tpu.core_type<tc>, window_params = [{transform_indices = @transform_0, window_bounds = array<i64: 8, 200>}, {pipeline_mode = #tpu.pipeline_mode<synchronous>, transform_indices = @transform_1, window_bounds = array<i64: 200, 256>}, {pipeline_mode = #tpu.pipeline_mode<synchronous>, transform_indices = @transform_2, window_bounds = array<i64: 1, 256>}, {pipeline_mode = #tpu.pipeline_mode<synchronous>, transform_indices = @transform_3, window_bounds = array<i64: 256, 128>}, {pipeline_mode = #tpu.pipeline_mode<synchronous>, transform_indices = @transform_4, window_bounds = array<i64: 1, 128>}, {pipeline_mode = #tpu.pipeline_mode<synchronous>, transform_indices = @transform_5, window_bounds = array<i64: 128, 128>}, {pipeline_mode = #tpu.pipeline_mode<synchronous>, transform_indices = @transform_6, window_bounds = array<i64: 1, 128>}, {pipeline_mode = #tpu.pipeline_mode<synchronous>, transform_indices = @transform_7, window_bounds = array<i64: 128, 128>}, {pipeline_mode = #tpu.pipeline_mode<synchronous>, transform_indices = @transform_8, window_bounds = array<i64: 1, 128>}, {transform_indices = @transform_9, window_bounds = array<i64: 8, 128>}]} {
    %c0 = arith.constant 0 : index
    %c0_0 = arith.constant 0 : index
    %0 = vector.load %arg1[%c0, %c0_0] : memref<8x200xbf16, #tpu.memory_space<vmem>>, vector<8x200xbf16>
    %c0_1 = arith.constant 0 : index
    %c0_2 = arith.constant 0 : index
    %1 = vector.load %arg2[%c0_1, %c0_2] : memref<200x256xbf16, #tpu.memory_space<vmem>>, vector<200x256xbf16>
    %cst = arith.constant dense<0.000000e+00> : vector<8x256xf32>
    %2 = tpu.matmul %0, %1, %cst {dimension_numbers = #tpu.dot_dimension_numbers<[1], [0], [0], [1], [0, 0, 1, 1], [], []>} : vector<8x200xbf16>, vector<200x256xbf16>, vector<8x256xf32> -> vector<8x256xf32>
    %c0_3 = arith.constant 0 : index
    %c0_4 = arith.constant 0 : index
    %3 = vector.load %arg3[%c0_3, %c0_4] : memref<1x256xf32, #tpu.memory_space<vmem>>, vector<1x256xf32>
    %4 = vector.broadcast %3 : vector<1x256xf32> to vector<8x256xf32>
    %5 = arith.addf %2, %4 : vector<8x256xf32>
    %cst_5 = arith.constant 0.000000e+00 : f32
    %6 = vector.broadcast %cst_5 : f32 to vector<8x256xf32>
    %7 = arith.maximumf %5, %6 : vector<8x256xf32>
    %8 = arith.truncf %7 : vector<8x256xf32> to vector<8x256xbf16>
    %c0_6 = arith.constant 0 : index
    %c0_7 = arith.constant 0 : index
    %9 = vector.load %arg4[%c0_6, %c0_7] : memref<256x128xbf16, #tpu.memory_space<vmem>>, vector<256x128xbf16>
    %cst_8 = arith.constant dense<0.000000e+00> : vector<8x128xf32>
    %10 = tpu.matmul %8, %9, %cst_8 {dimension_numbers = #tpu.dot_dimension_numbers<[1], [0], [0], [1], [0, 0, 1, 1], [], []>} : vector<8x256xbf16>, vector<256x128xbf16>, vector<8x128xf32> -> vector<8x128xf32>
    %c0_9 = arith.constant 0 : index
    %c0_10 = arith.constant 0 : index
    %11 = vector.load %arg5[%c0_9, %c0_10] : memref<1x128xf32, #tpu.memory_space<vmem>>, vector<1x128xf32>
    %12 = vector.broadcast %11 : vector<1x128xf32> to vector<8x128xf32>
    %13 = arith.addf %10, %12 : vector<8x128xf32>
    %cst_11 = arith.constant 0.000000e+00 : f32
    %14 = vector.broadcast %cst_11 : f32 to vector<8x128xf32>
    %15 = arith.maximumf %13, %14 : vector<8x128xf32>
    %16 = arith.truncf %15 : vector<8x128xf32> to vector<8x128xbf16>
    %c0_12 = arith.constant 0 : index
    %c0_13 = arith.constant 0 : index
    %17 = vector.load %arg6[%c0_12, %c0_13] : memref<128x128xbf16, #tpu.memory_space<vmem>>, vector<128x128xbf16>
    %cst_14 = arith.constant dense<0.000000e+00> : vector<8x128xf32>
    %18 = tpu.matmul %16, %17, %cst_14 {dimension_numbers = #tpu.dot_dimension_numbers<[1], [0], [0], [1], [0, 0, 1, 1], [], []>} : vector<8x128xbf16>, vector<128x128xbf16>, vector<8x128xf32> -> vector<8x128xf32>
    %c0_15 = arith.constant 0 : index
    %c0_16 = arith.constant 0 : index
    %19 = vector.load %arg7[%c0_15, %c0_16] : memref<1x128xf32, #tpu.memory_space<vmem>>, vector<1x128xf32>
    %20 = vector.broadcast %19 : vector<1x128xf32> to vector<8x128xf32>
    %21 = arith.addf %18, %20 : vector<8x128xf32>
    %cst_17 = arith.constant 0.000000e+00 : f32
    %22 = vector.broadcast %cst_17 : f32 to vector<8x128xf32>
    %23 = arith.maximumf %21, %22 : vector<8x128xf32>
    %24 = arith.truncf %23 : vector<8x128xf32> to vector<8x128xbf16>
    %c0_18 = arith.constant 0 : index
    %c0_19 = arith.constant 0 : index
    %25 = vector.load %arg8[%c0_18, %c0_19] : memref<128x128xbf16, #tpu.memory_space<vmem>>, vector<128x128xbf16>
    %cst_20 = arith.constant dense<0.000000e+00> : vector<8x128xf32>
    %26 = tpu.matmul %24, %25, %cst_20 {dimension_numbers = #tpu.dot_dimension_numbers<[1], [0], [0], [1], [0, 0, 1, 1], [], []>} : vector<8x128xbf16>, vector<128x128xbf16>, vector<8x128xf32> -> vector<8x128xf32>
    %c0_21 = arith.constant 0 : index
    %c0_22 = arith.constant 0 : index
    %27 = vector.load %arg9[%c0_21, %c0_22] : memref<1x128xf32, #tpu.memory_space<vmem>>, vector<1x128xf32>
    %28 = vector.broadcast %27 : vector<1x128xf32> to vector<8x128xf32>
    %29 = arith.addf %26, %28 : vector<8x128xf32>
    %30 = arith.truncf %29 : vector<8x128xf32> to vector<8x128xbf16>
    %c0_23 = arith.constant 0 : index
    %c0_24 = arith.constant 0 : index
    %31 = vector.load %arg10[%c0_23, %c0_24] : memref<8x128xbf16, #tpu.memory_space<vmem>>, vector<8x128xbf16>
    tpu.vector_store %arg10[%c0_23, %c0_24], %30 {strides = array<i32>} : memref<8x128xbf16, #tpu.memory_space<vmem>>, vector<8x128xbf16>,
    return
  }
  func.func @transform_0(%arg0: i32) -> (i32, i32) {
    %c0_i32 = arith.constant 0 : i32
    %c0_i32_0 = arith.constant 0 : i32
    return %arg0, %c0_i32 : i32, i32
  }
  func.func @transform_1(%arg0: i32) -> (i32, i32) {
    %c0_i32 = arith.constant 0 : i32
    %c0_i32_0 = arith.constant 0 : i32
    %c0_i32_1 = arith.constant 0 : i32
    return %c0_i32, %c0_i32_0 : i32, i32
  }
  func.func @transform_2(%arg0: i32) -> (i32, i32) {
    %c0_i32 = arith.constant 0 : i32
    %c0_i32_0 = arith.constant 0 : i32
    %c0_i32_1 = arith.constant 0 : i32
    return %c0_i32, %c0_i32_0 : i32, i32
  }
  func.func @transform_3(%arg0: i32) -> (i32, i32) {
    %c0_i32 = arith.constant 0 : i32
    %c0_i32_0 = arith.constant 0 : i32
    %c0_i32_1 = arith.constant 0 : i32
    return %c0_i32, %c0_i32_0 : i32, i32
  }
  func.func @transform_4(%arg0: i32) -> (i32, i32) {
    %c0_i32 = arith.constant 0 : i32
    %c0_i32_0 = arith.constant 0 : i32
    %c0_i32_1 = arith.constant 0 : i32
    return %c0_i32, %c0_i32_0 : i32, i32
  }
  func.func @transform_5(%arg0: i32) -> (i32, i32) {
    %c0_i32 = arith.constant 0 : i32
    %c0_i32_0 = arith.constant 0 : i32
    %c0_i32_1 = arith.constant 0 : i32
    return %c0_i32, %c0_i32_0 : i32, i32
  }
  func.func @transform_6(%arg0: i32) -> (i32, i32) {
    %c0_i32 = arith.constant 0 : i32
    %c0_i32_0 = arith.constant 0 : i32
    %c0_i32_1 = arith.constant 0 : i32
    return %c0_i32, %c0_i32_0 : i32, i32
  }
  func.func @transform_7(%arg0: i32) -> (i32, i32) {
    %c0_i32 = arith.constant 0 : i32
    %c0_i32_0 = arith.constant 0 : i32
    %c0_i32_1 = arith.constant 0 : i32
    return %c0_i32, %c0_i32_0 : i32, i32
  }
  func.func @transform_8(%arg0: i32) -> (i32, i32) {
    %c0_i32 = arith.constant 0 : i32
    %c0_i32_0 = arith.constant 0 : i32
    %c0_i32_1 = arith.constant 0 : i32
    return %c0_i32, %c0_i32_0 : i32, i32
  }
  func.func @transform_9(%arg0: i32) -> (i32, i32) {
    %c0_i32 = arith.constant 0 : i32
    %c0_i32_0 = arith.constant 0 : i32
    return %arg0, %c0_i32 : i32, i32
  }
}

</mosaic_0001>

<llo_original>
// kernel: mlp_forward.1
$region0: #{mlp_forward.1}
  #allocation0 [shape = 'u32[]', space=smem, size = 0x4, offset = 0x4, fixed_abs, tag = 'smem constant byte address 0x4 - core index']
  #allocation1 [shape = 'u32[144,128]{1,0:T(1,128)}', space=vmem, size = 0x12000, scoped, tag = 'internal scratch']
  %s0 = inlined_call_operand.vmem [shape: bf16[8,200], index: 0, kind: input, shape index: {}]
  %s1 = inlined_call_operand.hbm [shape: bf16[200,256], index: 1, kind: input, shape index: {}]
  %s2 = inlined_call_operand.vmem [shape: f32[1,256], index: 2, kind: input, shape index: {}]
  %s3 = inlined_call_operand.hbm [shape: bf16[256,128], index: 3, kind: input, shape index: {}]
  %s4 = inlined_call_operand.vmem [shape: f32[1,128], index: 4, kind: input, shape index: {}]
  %s5 = inlined_call_operand.hbm [shape: bf16[128,128], index: 5, kind: input, shape index: {}]
  %s6 = inlined_call_operand.vmem [shape: f32[1,128], index: 6, kind: input, shape index: {}]
  %s7 = inlined_call_operand.hbm [shape: bf16[128,128], index: 7, kind: input, shape index: {}]
  %s8 = inlined_call_operand.vmem [shape: f32[1,128], index: 8, kind: input, shape index: {}]
  %s9 = inlined_call_operand.hbm [shape: bf16[8,128], index: 9, kind: output, shape index: {}]
  %s10 = sld [smem:[#allocation0]]
  $region62: #{mlp_forward.1} parent=0
    _
  %s12 = ssub.s32 1, %s10
  %s13 = scalar_select 0, %s12, %s10
  $region1: #{mlp_forward.1} parent=0
    #allocation2 [shape = 'u8[102400]{0}', space=vmem, size = 0x19000, scoped, tag = 'input window, operand 1, single buffered']
    #allocation3 [shape = 's32[1]{0}', space=sflag, size = 0x4, scoped, tag = 'scoped memory for mlp_forward.1']
    #allocation4 [shape = 's32[1]{0}', space=sflag, size = 0x4, scoped, tag = 'scoped memory for mlp_forward.1']
    #allocation5 [shape = 'u8[65536]{0}', space=vmem, size = 0x10000, scoped, tag = 'input window, operand 3, single buffered']
    #allocation6 [shape = 's32[1]{0}', space=sflag, size = 0x4, scoped, tag = 'scoped memory for mlp_forward.1']
    #allocation7 [shape = 'u8[32768]{0}', space=vmem, size = 0x8000, scoped, tag = 'input window, operand 5, single buffered']
    #allocation8 [shape = 'u8[32768]{0}', space=vmem, size = 0x8000, scoped, tag = 'input window, operand 7, single buffered']
    #allocation9 [shape = 's32[1]{0}', space=sflag, size = 0x4, scoped, tag = 'scoped memory for mlp_forward.1']
    #allocation10 [shape = 'u8[2048]{0}', space=vmem, size = 0x800, scoped, tag = 'output window, operand 0, single buffered']
    %14 = vsyncpa [#allocation3], 0
    %15 = vsyncpa [#allocation6], 0
    %16 = vsyncpa [#allocation9], 0
    %17 = vsyncpa [#allocation4], 0
    // Predicated region
    $region2: #{mlp_forward.1} parent=1 // pred_check
      _
    $region3: #{mlp_forward.1} parent=1 // pred_check_branch
      %19 = sbr.rel (0) target = $region5
    $region4: #{mlp_forward.1} parent=1 // pred_region
      _
    $region5: #{mlp_forward.1} parent=1 // pred_fallthru
      _
    // Predicated region
    $region6: #{mlp_forward.1} parent=1 // pred_check
      _
    $region7: #{mlp_forward.1} parent=1 // pred_check_branch
      %21 = sbr.rel (0) target = $region9
    $region8: #{mlp_forward.1} parent=1 // pred_region
      %s23 = ssub.s32 3200, 3200
      %24 = vsyncadd [#allocation3], %s23
      %s25 = sshll.u32 [#allocation2], 4
      %s26 = int_to_ptr.vmem [resolvable:$true] %s25
      %31 = dma.hbm_to_vmem [thread:$0]  %s1, 3200, %s26, [#allocation3], 128, 128, 8
    $region9: #{mlp_forward.1} parent=1 // pred_fallthru
      _
    // Predicated region
    $region10: #{mlp_forward.1} parent=1 // pred_check
      _
    $region11: #{mlp_forward.1} parent=1 // pred_check_branch
      %33 = sbr.rel (0) target = $region13
    $region12: #{mlp_forward.1} parent=1 // pred_region
      _
    $region13: #{mlp_forward.1} parent=1 // pred_fallthru
      _
    // Predicated region
    $region14: #{mlp_forward.1} parent=1 // pred_check
      _
    $region15: #{mlp_forward.1} parent=1 // pred_check_branch
      %35 = sbr.rel (0) target = $region17
    $region16: #{mlp_forward.1} parent=1 // pred_region
      %s37 = ssub.s32 2048, 2048
      %38 = vsyncadd [#allocation6], %s37
      %s39 = sshll.u32 [#allocation5], 4
      %s40 = int_to_ptr.vmem [resolvable:$true] %s39
      %45 = dma.hbm_to_vmem [thread:$0]  %s3, 2048, %s40, [#allocation6], 64, 64, 4
    $region17: #{mlp_forward.1} parent=1 // pred_fallthru
      _
    // Predicated region
    $region18: #{mlp_forward.1} parent=1 // pred_check
      _
    $region19: #{mlp_forward.1} parent=1 // pred_check_branch
      %47 = sbr.rel (0) target = $region21
    $region20: #{mlp_forward.1} parent=1 // pred_region
      _
    $region21: #{mlp_forward.1} parent=1 // pred_fallthru
      _
    // Predicated region
    $region22: #{mlp_forward.1} parent=1 // pred_check
      _
    $region23: #{mlp_forward.1} parent=1 // pred_check_branch
      %49 = sbr.rel (0) target = $region25
    $region24: #{mlp_forward.1} parent=1 // pred_region
      %s51 = ssub.s32 1024, 1024
      %52 = vsyncadd [#allocation6], %s51
      %s53 = sshll.u32 [#allocation7], 4
      %s54 = int_to_ptr.vmem [resolvable:$true] %s53
      %59 = dma.hbm_to_vmem [thread:$0]  %s5, 1024, %s54, [#allocation6], 64, 64, 4
    $region25: #{mlp_forward.1} parent=1 // pred_fallthru
      _
    // Predicated region
    $region26: #{mlp_forward.1} parent=1 // pred_check
      _
    $region27: #{mlp_forward.1} parent=1 // pred_check_branch
      %61 = sbr.rel (0) target = $region29
    $region28: #{mlp_forward.1} parent=1 // pred_region
      _
    $region29: #{mlp_forward.1} parent=1 // pred_fallthru
      _
    // Predicated region
    $region30: #{mlp_forward.1} parent=1 // pred_check
      _
    $region31: #{mlp_forward.1} parent=1 // pred_check_branch
      %63 = sbr.rel (0) target = $region33
    $region32: #{mlp_forward.1} parent=1 // pred_region
      %s65 = ssub.s32 1024, 1024
      %66 = vsyncadd [#allocation9], %s65
      %s67 = sshll.u32 [#allocation8], 4
      %s68 = int_to_ptr.vmem [resolvable:$true] %s67
      %73 = dma.hbm_to_vmem [thread:$0]  %s7, 1024, %s68, [#allocation9], 64, 64, 4
    $region33: #{mlp_forward.1} parent=1 // pred_fallthru
      _
    // Predicated region
    $region34: #{mlp_forward.1} parent=1 // pred_check
      _
    $region35: #{mlp_forward.1} parent=1 // pred_check_branch
      %75 = sbr.rel (0) target = $region37
    $region36: #{mlp_forward.1} parent=1 // pred_region
      _
    $region37: #{mlp_forward.1} parent=1 // pred_fallthru
      _
    // Predicated region
    $region38: #{mlp_forward.1} parent=1 // pred_check
      _
    $region39: #{mlp_forward.1} parent=1 // pred_check_branch
      %77 = sbr.rel (0) target = $region41
    $region40: #{mlp_forward.1} parent=1 // pred_region
      %78 = dma.done [#allocation3], 3200
    $region41: #{mlp_forward.1} parent=1 // pred_fallthru
      _
    // Predicated region
    $region42: #{mlp_forward.1} parent=1 // pred_check
      _
    $region43: #{mlp_forward.1} parent=1 // pred_check_branch
      %80 = sbr.rel (0) target = $region45
    $region44: #{mlp_forward.1} parent=1 // pred_region
      %81 = dma.done [#allocation6], 2048
    $region45: #{mlp_forward.1} parent=1 // pred_fallthru
      _
    // Predicated region
    $region46: #{mlp_forward.1} parent=1 // pred_check
      _
    $region47: #{mlp_forward.1} parent=1 // pred_check_branch
      %83 = sbr.rel (0) target = $region49
    $region48: #{mlp_forward.1} parent=1 // pred_region
      %84 = dma.done [#allocation6], 1024
    $region49: #{mlp_forward.1} parent=1 // pred_fallthru
      _
    // Predicated region
    $region50: #{mlp_forward.1} parent=1 // pred_check
      _
    $region51: #{mlp_forward.1} parent=1 // pred_check_branch
      %86 = sbr.rel (0) target = $region53
    $region52: #{mlp_forward.1} parent=1 // pred_region
      %87 = dma.done [#allocation9], 1024
    $region53: #{mlp_forward.1} parent=1 // pred_fallthru
      _
    %v89 = vld [vmem:[%s0] sm:$0xff]
    %v90 = vld [vmem:[#allocation2] sm:$0xff]
    %v91 = vld [vmem:[#allocation2 + $0x8] sm:$0xff]
    %v92 = vld [vmem:[#allocation2 + $0x10] sm:$0xff]
    %v93 = vld [vmem:[#allocation2 + $0x18] sm:$0xff]
    %v94 = vld [vmem:[#allocation2 + $0x20] sm:$0xff]
    %v95 = vld [vmem:[#allocation2 + $0x28] sm:$0xff]
    %v96 = vld [vmem:[#allocation2 + $0x30] sm:$0xff]
    %v97 = vld [vmem:[#allocation2 + $0x38] sm:$0xff]
    %v98 = vld [vmem:[#allocation2 + $0x40] sm:$0xff]
    %v99 = vld [vmem:[#allocation2 + $0x48] sm:$0xff]
    %v100 = vld [vmem:[#allocation2 + $0x50] sm:$0xff]
    %v101 = vld [vmem:[#allocation2 + $0x58] sm:$0xff]
    %v102 = vld [vmem:[#allocation2 + $0x60] sm:$0xff]
    %v103 = vld [vmem:[#allocation2 + $0x68] sm:$0xff]
    %v104 = vld [vmem:[#allocation2 + $0x70] sm:$0xff]
    %v105 = vld [vmem:[#allocation2 + $0x78] sm:$0xff]
    %v106 = vld [vmem:[#allocation2 + $0x80] sm:$0xff]
    %v107 = vld [vmem:[#allocation2 + $0x88] sm:$0xff]
    %v108 = vld [vmem:[#allocation2 + $0x90] sm:$0xff]
    %v109 = vld [vmem:[#allocation2 + $0x98] sm:$0xff]
    %v110 = vld [vmem:[#allocation2 + $0xa0] sm:$0xff]
    %v111 = vld [vmem:[#allocation2 + $0xa8] sm:$0xff]
    %v112 = vld [vmem:[#allocation2 + $0xb0] sm:$0xff]
    %v113 = vld [vmem:[#allocation2 + $0xb8] sm:$0xff]
    %v114 = vld [vmem:[#allocation2 + $0xc0] sm:$0xff]
    %v115 = vld [vmem:[%s2] sm:$0x3]
    %v117 = vlaneseq
    %v118 = vshrl.u32 %v117, 7
    %v119 = vsub.s32 0, %v118
    %v120 = vrot.slane %v115, %v119
    %v121 = vlaneseq
    %v122 = vshrl.u32 %v121, 7
    %v123 = vsub.s32 1, %v122
    %v124 = vrot.slane %v115, %v123
    %v128 = vunpack.c.l.b16 %v89
    %v129 = vunpack.c.h.b16 %v89
    %v130 = vpack.c.b16 %v128, %v128
    %v131 = vpack.c.b16 %v129, %v129
    %v158 = vunpack.c.l.b16 %v90
    %v159 = vunpack.c.h.b16 %v90
    %v160 = vunpack.c.l.b16 %v91
    %v161 = vunpack.c.h.b16 %v91
    %v162 = vunpack.c.l.b16 %v92
    %v163 = vunpack.c.h.b16 %v92
    %v164 = vunpack.c.l.b16 %v93
    %v165 = vunpack.c.h.b16 %v93
    %v166 = vunpack.c.l.b16 %v94
    %v167 = vunpack.c.h.b16 %v94
    %v168 = vunpack.c.l.b16 %v95
    %v169 = vunpack.c.h.b16 %v95
    %v170 = vunpack.c.l.b16 %v96
    %v171 = vunpack.c.h.b16 %v96
    %v172 = vunpack.c.l.b16 %v97
    %v173 = vunpack.c.h.b16 %v97
    %v174 = vunpack.c.l.b16 %v98
    %v175 = vunpack.c.h.b16 %v98
    %v176 = vunpack.c.l.b16 %v99
    %v177 = vunpack.c.h.b16 %v99
    %v178 = vunpack.c.l.b16 %v100
    %v179 = vunpack.c.h.b16 %v100
    %v180 = vunpack.c.l.b16 %v101
    %v181 = vunpack.c.h.b16 %v101
    %v182 = vunpack.c.l.b16 %v102
    %v183 = vunpack.c.h.b16 %v102
    %v184 = vunpack.c.l.b16 %v103
    %v185 = vunpack.c.h.b16 %v103
    %v186 = vunpack.c.l.b16 %v104
    %v187 = vunpack.c.h.b16 %v104
    %v188 = vunpack.c.l.b16 %v105
    %v189 = vunpack.c.h.b16 %v105
    %v190 = vunpack.c.l.b16 %v106
    %v191 = vunpack.c.h.b16 %v106
    %v192 = vunpack.c.l.b16 %v107
    %v193 = vunpack.c.h.b16 %v107
    %v194 = vunpack.c.l.b16 %v108
    %v195 = vunpack.c.h.b16 %v108
    %v196 = vunpack.c.l.b16 %v109
    %v197 = vunpack.c.h.b16 %v109
    %v198 = vunpack.c.l.b16 %v110
    %v199 = vunpack.c.h.b16 %v110
    %v200 = vunpack.c.l.b16 %v111
    %v201 = vunpack.c.h.b16 %v111
    %v202 = vunpack.c.l.b16 %v112
    %v203 = vunpack.c.h.b16 %v112
    %v204 = vunpack.c.l.b16 %v113
    %v205 = vunpack.c.h.b16 %v113
    %v206 = vunpack.c.l.b16 %v114
    %v207 = vunpack.c.h.b16 %v114
    %v208 = vpack.c.b16 %v160, %v158
    %v209 = vpack.c.b16 %v161, %v159
    %v210 = vpack.c.b16 %v164, %v162
    %v211 = vpack.c.b16 %v165, %v163
    %v212 = vpack.c.b16 %v168, %v166
    %v213 = vpack.c.b16 %v169, %v167
    %v214 = vpack.c.b16 %v172, %v170
    %v215 = vpack.c.b16 %v173, %v171
    %v216 = vpack.c.b16 %v176, %v174
    %v217 = vpack.c.b16 %v177, %v175
    %v218 = vpack.c.b16 %v180, %v178
    %v219 = vpack.c.b16 %v181, %v179
    %v220 = vpack.c.b16 %v184, %v182
    %v221 = vpack.c.b16 %v185, %v183
    %v222 = vpack.c.b16 %v188, %v186
    %v223 = vpack.c.b16 %v189, %v187
    %v224 = vpack.c.b16 %v192, %v190
    %v225 = vpack.c.b16 %v193, %v191
    %v226 = vpack.c.b16 %v196, %v194
    %v227 = vpack.c.b16 %v197, %v195
    %v228 = vpack.c.b16 %v200, %v198
    %v229 = vpack.c.b16 %v201, %v199
    %v230 = vpack.c.b16 %v204, %v202
    %v231 = vpack.c.b16 %v205, %v203
    %v232 = vpack.c.b16 %v206, %v206
    %v233 = vpack.c.b16 %v207, %v207
    %vm258 = vcmask 588800
    %v260 = vsel %vm258, %v131, 0
    %vm262 = vcmask 1043456
    %v264 = vsel %vm262, %v232, 0
    %v267 = vsel %vm262, %v233, 0
    %269 = vmatprep.subr.bf16.mxu0 %v209
    %270 = vmatpush1.bf16.msra.mxu0 %v208
    %271 = vmatprep.subr.bf16.mxu0 %v211
    %272 = vmatpush1.bf16.msra.mxu0 %v210
    %273 = vmatprep.subr.bf16.mxu0 %v213
    %274 = vmatpush1.bf16.msra.mxu0 %v212
    %275 = vmatprep.subr.bf16.mxu0 %v215
    %276 = vmatpush1.bf16.msra.mxu0 %v214
    %277 = vmatprep.subr.bf16.mxu0 %v217
    %278 = vmatpush1.bf16.msra.mxu0 %v216
    %279 = vmatprep.subr.bf16.mxu0 %v219
    %280 = vmatpush1.bf16.msra.mxu0 %v218
    %281 = vmatprep.subr.bf16.mxu0 %v221
    %282 = vmatpush1.bf16.msra.mxu0 %v220
    %283 = vmatprep.subr.bf16.mxu0 %v223
    %284 = vmatpush1.bf16.msra.mxu0 %v222
    %285 = vmatprep.subr.bf16.mxu0 %v225
    %286 = vmatpush1.bf16.msra.mxu0 %v224
    %287 = vmatprep.subr.bf16.mxu0 %v227
    %288 = vmatpush1.bf16.msra.mxu0 %v226
    %289 = vmatprep.subr.bf16.mxu0 %v229
    %290 = vmatpush1.bf16.msra.mxu0 %v228
    %291 = vmatprep.subr.bf16.mxu0 %v231
    %292 = vmatpush1.bf16.msra.mxu0 %v230
    %293 = vmatprep.subr.bf16.mxu0 %v267
    %294 = vmatpush1.bf16.msra.mxu0 %v264
    %295 = vmatprep.subr.bf16.mxu0 0
    %296 = vmatpush1.bf16.msra.mxu0 0
    %297 = vmatprep.subr.bf16.mxu0 0
    %298 = vmatpush1.bf16.msra.mxu0 0
    %299 = vmatprep.subr.bf16.mxu0 0
    %300 = vmatpush1.bf16.msra.mxu0 0
    %301 = vmatprep.mubr.bf16.mxu0 %v260
    %302 = vmatmul.mubr.bf16.gmra.mrb[0].mxu0 %v130
    %v303 = vpop.f32.mrb[0].mxu0
    %v304 = vadd.f32 %v120, %v303
    %v305 = vpop.f32.mrb[0].mxu0
    %v306 = vadd.f32 %v124, %v305
    %v307 = vpop.f32.mrb[0].mxu0
    %v308 = vpop.f32.mrb[0].mxu0
    %309 = vdwg.mxu0
    %v310 = vmax.f32 %v304, 0.0
    %v311 = vmax.f32 %v306, 0.0
    %v312 = vpack.c.bf16 %v310, %v310
    %v313 = vpack.c.bf16 %v311, %v311
    %v314 = vld [vmem:[#allocation5] sm:$0xf]
    %v315 = vld [vmem:[#allocation5 + $0x4] sm:$0xf]
    %v316 = vld [vmem:[#allocation5 + $0x8] sm:$0xf]
    %v317 = vld [vmem:[#allocation5 + $0xc] sm:$0xf]
    %v318 = vld [vmem:[#allocation5 + $0x10] sm:$0xf]
    %v319 = vld [vmem:[#allocation5 + $0x14] sm:$0xf]
    %v320 = vld [vmem:[#allocation5 + $0x18] sm:$0xf]
    %v321 = vld [vmem:[#allocation5 + $0x1c] sm:$0xf]
    %v322 = vld [vmem:[#allocation5 + $0x20] sm:$0xf]
    %v323 = vld [vmem:[#allocation5 + $0x24] sm:$0xf]
    %v324 = vld [vmem:[#allocation5 + $0x28] sm:$0xf]
    %v325 = vld [vmem:[#allocation5 + $0x2c] sm:$0xf]
    %v326 = vld [vmem:[#allocation5 + $0x30] sm:$0xf]
    %v327 = vld [vmem:[#allocation5 + $0x34] sm:$0xf]
    %v328 = vld [vmem:[#allocation5 + $0x38] sm:$0xf]
    %v329 = vld [vmem:[#allocation5 + $0x3c] sm:$0xf]
    %v330 = vld [vmem:[#allocation5 + $0x40] sm:$0xf]
    %v331 = vld [vmem:[#allocation5 + $0x44] sm:$0xf]
    %v332 = vld [vmem:[#allocation5 + $0x48] sm:$0xf]
    %v333 = vld [vmem:[#allocation5 + $0x4c] sm:$0xf]
    %v334 = vld [vmem:[#allocation5 + $0x50] sm:$0xf]
    %v335 = vld [vmem:[#allocation5 + $0x54] sm:$0xf]
    %v336 = vld [vmem:[#allocation5 + $0x58] sm:$0xf]
    %v337 = vld [vmem:[#allocation5 + $0x5c] sm:$0xf]
    %v338 = vld [vmem:[#allocation5 + $0x60] sm:$0xf]
    %v339 = vld [vmem:[#allocation5 + $0x64] sm:$0xf]
    %v340 = vld [vmem:[#allocation5 + $0x68] sm:$0xf]
    %v341 = vld [vmem:[#allocation5 + $0x6c] sm:$0xf]
    %v342 = vld [vmem:[#allocation5 + $0x70] sm:$0xf]
    %v343 = vld [vmem:[#allocation5 + $0x74] sm:$0xf]
    %v344 = vld [vmem:[#allocation5 + $0x78] sm:$0xf]
    %v345 = vld [vmem:[#allocation5 + $0x7c] sm:$0xf]
    %v346 = vld [vmem:[%s4] sm:$0x1]
    %v348 = vlaneseq
    %v349 = vshrl.u32 %v348, 7
    %v350 = vsub.s32 0, %v349
    %v351 = vrot.slane %v346, %v350
    %v385 = vunpack.c.l.b16 %v314
    %v386 = vunpack.c.l.b16 %v315
    %v387 = vunpack.c.l.b16 %v316
    %v388 = vunpack.c.l.b16 %v317
    %v389 = vunpack.c.l.b16 %v318
    %v390 = vunpack.c.l.b16 %v319
    %v391 = vunpack.c.l.b16 %v320
    %v392 = vunpack.c.l.b16 %v321
    %v393 = vunpack.c.l.b16 %v322
    %v394 = vunpack.c.l.b16 %v323
    %v395 = vunpack.c.l.b16 %v324
    %v396 = vunpack.c.l.b16 %v325
    %v397 = vunpack.c.l.b16 %v326
    %v398 = vunpack.c.l.b16 %v327
    %v399 = vunpack.c.l.b16 %v328
    %v400 = vunpack.c.l.b16 %v329
    %v401 = vunpack.c.l.b16 %v330
    %v402 = vunpack.c.l.b16 %v331
    %v403 = vunpack.c.l.b16 %v332
    %v404 = vunpack.c.l.b16 %v333
    %v405 = vunpack.c.l.b16 %v334
    %v406 = vunpack.c.l.b16 %v335
    %v407 = vunpack.c.l.b16 %v336
    %v408 = vunpack.c.l.b16 %v337
    %v409 = vunpack.c.l.b16 %v338
    %v410 = vunpack.c.l.b16 %v339
    %v411 = vunpack.c.l.b16 %v340
    %v412 = vunpack.c.l.b16 %v341
    %v413 = vunpack.c.l.b16 %v342
    %v414 = vunpack.c.l.b16 %v343
    %v415 = vunpack.c.l.b16 %v344
    %v416 = vunpack.c.l.b16 %v345
    %v417 = vpack.c.b16 %v386, %v385
    %v418 = vpack.c.b16 %v388, %v387
    %v419 = vpack.c.b16 %v390, %v389
    %v420 = vpack.c.b16 %v392, %v391
    %v421 = vpack.c.b16 %v394, %v393
    %v422 = vpack.c.b16 %v396, %v395
    %v423 = vpack.c.b16 %v398, %v397
    %v424 = vpack.c.b16 %v400, %v399
    %v425 = vpack.c.b16 %v402, %v401
    %v426 = vpack.c.b16 %v404, %v403
    %v427 = vpack.c.b16 %v406, %v405
    %v428 = vpack.c.b16 %v408, %v407
    %v429 = vpack.c.b16 %v410, %v409
    %v430 = vpack.c.b16 %v412, %v411
    %v431 = vpack.c.b16 %v414, %v413
    %v432 = vpack.c.b16 %v416, %v415
    %449 = vmatprep.subr.bf16.mxu0 0
    %450 = vmatpush1.bf16.msra.mxu0 %v417
    %451 = vmatprep.subr.bf16.mxu0 0
    %452 = vmatpush1.bf16.msra.mxu0 %v418
    %453 = vmatprep.subr.bf16.mxu0 0
    %454 = vmatpush1.bf16.msra.mxu0 %v419
    %455 = vmatprep.subr.bf16.mxu0 0
    %456 = vmatpush1.bf16.msra.mxu0 %v420
    %457 = vmatprep.subr.bf16.mxu0 0
    %458 = vmatpush1.bf16.msra.mxu0 %v421
    %459 = vmatprep.subr.bf16.mxu0 0
    %460 = vmatpush1.bf16.msra.mxu0 %v422
    %461 = vmatprep.subr.bf16.mxu0 0
    %462 = vmatpush1.bf16.msra.mxu0 %v423
    %463 = vmatprep.subr.bf16.mxu0 0
    %464 = vmatpush1.bf16.msra.mxu0 %v424
    %465 = vmatprep.subr.bf16.mxu0 0
    %466 = vmatpush1.bf16.msra.mxu0 %v425
    %467 = vmatprep.subr.bf16.mxu0 0
    %468 = vmatpush1.bf16.msra.mxu0 %v426
    %469 = vmatprep.subr.bf16.mxu0 0
    %470 = vmatpush1.bf16.msra.mxu0 %v427
    %471 = vmatprep.subr.bf16.mxu0 0
    %472 = vmatpush1.bf16.msra.mxu0 %v428
    %473 = vmatprep.subr.bf16.mxu0 0
    %474 = vmatpush1.bf16.msra.mxu0 %v429
    %475 = vmatprep.subr.bf16.mxu0 0
    %476 = vmatpush1.bf16.msra.mxu0 %v430
    %477 = vmatprep.subr.bf16.mxu0 0
    %478 = vmatpush1.bf16.msra.mxu0 %v431
    %479 = vmatprep.subr.bf16.mxu0 0
    %480 = vmatpush1.bf16.msra.mxu0 %v432
    %481 = vmatprep.mubr.bf16.mxu0 %v313
    %482 = vmatmul.mubr.bf16.gmra.mrb[0].mxu0 %v312
    %v483 = vpop.f32.mrb[0].mxu0
    %v484 = vadd.f32 %v351, %v483
    %v485 = vpop.f32.mrb[0].mxu0
    %v486 = vpop.f32.mrb[0].mxu0
    %v487 = vpop.f32.mrb[0].mxu0
    %488 = vdwg.mxu0
    %v489 = vmax.f32 %v484, 0.0
    %v490 = vpack.c.bf16 %v489, %v489
    %v491 = vld [vmem:[#allocation7] sm:$0xf]
    %v492 = vld [vmem:[#allocation7 + $0x4] sm:$0xf]
    %v493 = vld [vmem:[#allocation7 + $0x8] sm:$0xf]
    %v494 = vld [vmem:[#allocation7 + $0xc] sm:$0xf]
    %v495 = vld [vmem:[#allocation7 + $0x10] sm:$0xf]
    %v496 = vld [vmem:[#allocation7 + $0x14] sm:$0xf]
    %v497 = vld [vmem:[#allocation7 + $0x18] sm:$0xf]
    %v498 = vld [vmem:[#allocation7 + $0x1c] sm:$0xf]
    %v499 = vld [vmem:[#allocation7 + $0x20] sm:$0xf]
    %v500 = vld [vmem:[#allocation7 + $0x24] sm:$0xf]
    %v501 = vld [vmem:[#allocation7 + $0x28] sm:$0xf]
    %v502 = vld [vmem:[#allocation7 + $0x2c] sm:$0xf]
    %v503 = vld [vmem:[#allocation7 + $0x30] sm:$0xf]
    %v504 = vld [vmem:[#allocation7 + $0x34] sm:$0xf]
    %v505 = vld [vmem:[#allocation7 + $0x38] sm:$0xf]
    %v506 = vld [vmem:[#allocation7 + $0x3c] sm:$0xf]
    %v507 = vld [vmem:[%s6] sm:$0x1]
    %v509 = vlaneseq
    %v510 = vshrl.u32 %v509, 7
    %v511 = vsub.s32 0, %v510
    %v512 = vrot.slane %v507, %v511
    %v530 = vunpack.c.l.b16 %v491
    %v531 = vunpack.c.l.b16 %v492
    %v532 = vunpack.c.l.b16 %v493
    %v533 = vunpack.c.l.b16 %v494
    %v534 = vunpack.c.l.b16 %v495
    %v535 = vunpack.c.l.b16 %v496
    %v536 = vunpack.c.l.b16 %v497
    %v537 = vunpack.c.l.b16 %v498
    %v538 = vunpack.c.l.b16 %v499
    %v539 = vunpack.c.l.b16 %v500
    %v540 = vunpack.c.l.b16 %v501
    %v541 = vunpack.c.l.b16 %v502
    %v542 = vunpack.c.l.b16 %v503
    %v543 = vunpack.c.l.b16 %v504
    %v544 = vunpack.c.l.b16 %v505
    %v545 = vunpack.c.l.b16 %v506
    %v546 = vpack.c.b16 %v531, %v530
    %v547 = vpack.c.b16 %v533, %v532
    %v548 = vpack.c.b16 %v535, %v534
    %v549 = vpack.c.b16 %v537, %v536
    %v550 = vpack.c.b16 %v539, %v538
    %v551 = vpack.c.b16 %v541, %v540
    %v552 = vpack.c.b16 %v543, %v542
    %v553 = vpack.c.b16 %v545, %v544
    %562 = vmatprep.subr.bf16.mxu0 0
    %563 = vmatpush1.bf16.msra.mxu0 %v546
    %564 = vmatprep.subr.bf16.mxu0 0
    %565 = vmatpush1.bf16.msra.mxu0 %v547
    %566 = vmatprep.subr.bf16.mxu0 0
    %567 = vmatpush1.bf16.msra.mxu0 %v548
    %568 = vmatprep.subr.bf16.mxu0 0
    %569 = vmatpush1.bf16.msra.mxu0 %v549
    %570 = vmatprep.subr.bf16.mxu0 0
    %571 = vmatpush1.bf16.msra.mxu0 %v550
    %572 = vmatprep.subr.bf16.mxu0 0
    %573 = vmatpush1.bf16.msra.mxu0 %v551
    %574 = vmatprep.subr.bf16.mxu0 0
    %575 = vmatpush1.bf16.msra.mxu0 %v552
    %576 = vmatprep.subr.bf16.mxu0 0
    %577 = vmatpush1.bf16.msra.mxu0 %v553
    %578 = vmatprep.subr.bf16.mxu0 0
    %579 = vmatpush1.bf16.msra.mxu0 0
    %580 = vmatprep.subr.bf16.mxu0 0
    %581 = vmatpush1.bf16.msra.mxu0 0
    %582 = vmatprep.subr.bf16.mxu0 0
    %583 = vmatpush1.bf16.msra.mxu0 0
    %584 = vmatprep.subr.bf16.mxu0 0
    %585 = vmatpush1.bf16.msra.mxu0 0
    %586 = vmatprep.subr.bf16.mxu0 0
    %587 = vmatpush1.bf16.msra.mxu0 0
    %588 = vmatprep.subr.bf16.mxu0 0
    %589 = vmatpush1.bf16.msra.mxu0 0
    %590 = vmatprep.subr.bf16.mxu0 0
    %591 = vmatpush1.bf16.msra.mxu0 0
    %592 = vmatprep.subr.bf16.mxu0 0
    %593 = vmatpush1.bf16.msra.mxu0 0
    %594 = vmatprep.mubr.bf16.mxu0 0
    %595 = vmatmul.mubr.bf16.gmra.mrb[0].mxu0 %v490
    %v596 = vpop.f32.mrb[0].mxu0
    %v597 = vadd.f32 %v512, %v596
    %v598 = vpop.f32.mrb[0].mxu0
    %v599 = vpop.f32.mrb[0].mxu0
    %v600 = vpop.f32.mrb[0].mxu0
    %601 = vdwg.mxu0
    %v602 = vmax.f32 %v597, 0.0
    %v603 = vpack.c.bf16 %v602, %v602
    %v604 = vld [vmem:[#allocation8] sm:$0xf]
    %v605 = vld [vmem:[#allocation8 + $0x4] sm:$0xf]
    %v606 = vld [vmem:[#allocation8 + $0x8] sm:$0xf]
    %v607 = vld [vmem:[#allocation8 + $0xc] sm:$0xf]
    %v608 = vld [vmem:[#allocation8 + $0x10] sm:$0xf]
    %v609 = vld [vmem:[#allocation8 + $0x14] sm:$0xf]
    %v610 = vld [vmem:[#allocation8 + $0x18] sm:$0xf]
    %v611 = vld [vmem:[#allocation8 + $0x1c] sm:$0xf]
    %v612 = vld [vmem:[#allocation8 + $0x20] sm:$0xf]
    %v613 = vld [vmem:[#allocation8 + $0x24] sm:$0xf]
    %v614 = vld [vmem:[#allocation8 + $0x28] sm:$0xf]
    %v615 = vld [vmem:[#allocation8 + $0x2c] sm:$0xf]
    %v616 = vld [vmem:[#allocation8 + $0x30] sm:$0xf]
    %v617 = vld [vmem:[#allocation8 + $0x34] sm:$0xf]
    %v618 = vld [vmem:[#allocation8 + $0x38] sm:$0xf]
    %v619 = vld [vmem:[#allocation8 + $0x3c] sm:$0xf]
    %v620 = vld [vmem:[%s8] sm:$0x1]
    %v622 = vlaneseq
    %v623 = vshrl.u32 %v622, 7
    %v624 = vsub.s32 0, %v623
    %v625 = vrot.slane %v620, %v624
    %v643 = vunpack.c.l.b16 %v604
    %v644 = vunpack.c.l.b16 %v605
    %v645 = vunpack.c.l.b16 %v606
    %v646 = vunpack.c.l.b16 %v607
    %v647 = vunpack.c.l.b16 %v608
    %v648 = vunpack.c.l.b16 %v609
    %v649 = vunpack.c.l.b16 %v610
    %v650 = vunpack.c.l.b16 %v611
    %v651 = vunpack.c.l.b16 %v612
    %v652 = vunpack.c.l.b16 %v613
    %v653 = vunpack.c.l.b16 %v614
    %v654 = vunpack.c.l.b16 %v615
    %v655 = vunpack.c.l.b16 %v616
    %v656 = vunpack.c.l.b16 %v617
    %v657 = vunpack.c.l.b16 %v618
    %v658 = vunpack.c.l.b16 %v619
    %v659 = vpack.c.b16 %v644, %v643
    %v660 = vpack.c.b16 %v646, %v645
    %v661 = vpack.c.b16 %v648, %v647
    %v662 = vpack.c.b16 %v650, %v649
    %v663 = vpack.c.b16 %v652, %v651
    %v664 = vpack.c.b16 %v654, %v653
    %v665 = vpack.c.b16 %v656, %v655
    %v666 = vpack.c.b16 %v658, %v657
    %675 = vmatprep.subr.bf16.mxu0 0
    %676 = vmatpush1.bf16.msra.mxu0 %v659
    %677 = vmatprep.subr.bf16.mxu0 0
    %678 = vmatpush1.bf16.msra.mxu0 %v660
    %679 = vmatprep.subr.bf16.mxu0 0
    %680 = vmatpush1.bf16.msra.mxu0 %v661
    %681 = vmatprep.subr.bf16.mxu0 0
    %682 = vmatpush1.bf16.msra.mxu0 %v662
    %683 = vmatprep.subr.bf16.mxu0 0
    %684 = vmatpush1.bf16.msra.mxu0 %v663
    %685 = vmatprep.subr.bf16.mxu0 0
    %686 = vmatpush1.bf16.msra.mxu0 %v664
    %687 = vmatprep.subr.bf16.mxu0 0
    %688 = vmatpush1.bf16.msra.mxu0 %v665
    %689 = vmatprep.subr.bf16.mxu0 0
    %690 = vmatpush1.bf16.msra.mxu0 %v666
    %691 = vmatprep.subr.bf16.mxu0 0
    %692 = vmatpush1.bf16.msra.mxu0 0
    %693 = vmatprep.subr.bf16.mxu0 0
    %694 = vmatpush1.bf16.msra.mxu0 0
    %695 = vmatprep.subr.bf16.mxu0 0
    %696 = vmatpush1.bf16.msra.mxu0 0
    %697 = vmatprep.subr.bf16.mxu0 0
    %698 = vmatpush1.bf16.msra.mxu0 0
    %699 = vmatprep.subr.bf16.mxu0 0
    %700 = vmatpush1.bf16.msra.mxu0 0
    %701 = vmatprep.subr.bf16.mxu0 0
    %702 = vmatpush1.bf16.msra.mxu0 0
    %703 = vmatprep.subr.bf16.mxu0 0
    %704 = vmatpush1.bf16.msra.mxu0 0
    %705 = vmatprep.subr.bf16.mxu0 0
    %706 = vmatpush1.bf16.msra.mxu0 0
    %707 = vmatprep.mubr.bf16.mxu0 0
    %708 = vmatmul.mubr.bf16.gmra.mrb[0].mxu0 %v603
    %v709 = vpop.f32.mrb[0].mxu0
    %v710 = vadd.f32 %v625, %v709
    %v711 = vpop.f32.mrb[0].mxu0
    %v712 = vpop.f32.mrb[0].mxu0
    %v713 = vpop.f32.mrb[0].mxu0
    %714 = vdwg.mxu0
    %v715 = vpack.c.bf16 %v710, %v710
    %716 = vst [vmem:[#allocation10] sm:$0xf] %v715
    // Predicated region
    $region54: #{mlp_forward.1} parent=1 // pred_check
      _
    $region55: #{mlp_forward.1} parent=1 // pred_check_branch
      %718 = sbr.rel (0) target = $region57
    $region56: #{mlp_forward.1} parent=1 // pred_region
      %s720 = ssub.s32 64, 64
      %721 = vsyncadd [#allocation4], %s720
      %s723 = sshll.u32 [#allocation10], 4
      %s724 = int_to_ptr.vmem [resolvable:$true] %s723
      %726 = dma.vmem_to_hbm [thread:$0]  %s724, 64, %s9, [#allocation4]
    $region57: #{mlp_forward.1} parent=1 // pred_fallthru
      _
    // Predicated region
    $region58: #{mlp_forward.1} parent=1 // pred_check
      _
    $region59: #{mlp_forward.1} parent=1 // pred_check_branch
      %728 = sbr.rel (0) target = $region61
    $region60: #{mlp_forward.1} parent=1 // pred_region
      %729 = dma.done [#allocation4], 64
    $region61: #{mlp_forward.1} parent=1 // pred_fallthru
      _
    %730 = vsyncpa [#allocation3], 1
    %731 = vsyncpa [#allocation6], 1
    %732 = vsyncpa [#allocation9], 1
    %733 = vsyncpa [#allocation4], 1

</llo_original>
